<compile_context>
chip_gen: v7x
topology: tpu7x:2x2x1
jax: 0.10.0
libtpu: 0.0.40
codegen_flags: <defaults>
</compile_context>

<pallas_src>
import functools

import jax
import jax.numpy as jnp
from jax.experimental import pallas as pl
from jax.experimental.pallas import tpu as pltpu

_LANE = 128
_SUBLANE = 8


def _round_up(x, m):
    return ((x + m - 1) // m) * m


def _pad2(x, rows, cols):
    return jnp.pad(x, ((0, rows - x.shape[0]), (0, cols - x.shape[1])))


def _vmem_spec():
    return pl.BlockSpec(memory_space=pltpu.MemorySpace.VMEM)


# ----------------------------------------------------------------------------
# The fused kernel: conv1 (+relu) -> conv2 (+relu) -> fc, all node types.
# ----------------------------------------------------------------------------
def _fused_hetero_sage_kernel(a_ref, xd_ref, w1_ref, b1_ref, w2_ref, b2_ref,
                              wfc_ref, bfc_ref, o_ref, *, rows):
    """rows = (n_word_p, n_seq_p, n_pos_p); dst rows are stacked in that order.

    a_ref  : [N_tot, n_word_p] bf16  row-stacked mean adjacency (all edge types share x_word src)
    xd_ref : [N_tot, FP]       f32   row-stacked dst features, lane-padded (FP mult. of 128)
    w1_ref : [3, 2*FP, HP]     bf16  per-type [[W_l],[W_r]] for conv1 (zero-padded)
    w2_ref : [3, 2*HP, HP]     bf16  per-type [[W_l],[W_r]] for conv2
    b1/b2  : [3, 1, HP]        f32   per-type lin_l bias
    wfc    : [HP, OP]          bf16,  bfc: [1, OP] f32
    o_ref  : [n_word_p, OP]    f32
    """
    n_word = rows[0]
    a = a_ref[...]
    xd = xd_ref[...]

    def sage_layer(x_stack, w_ref, b_ref):
        # (1) shared-source mean aggregation for all three dst types: ONE matmul.
        src = x_stack[:n_word].astype(jnp.bfloat16)                    # [n_word_p, F] bf16
        agg = jnp.dot(a, src, preferred_element_type=jnp.float32)      # [N_tot, F]    f32
        # (2) merged lin_l / lin_r: [agg | x_dst] @ [[W_l],[W_r]] (concat at 128-lane boundary)
        x_cat = jnp.concatenate([agg, x_stack], axis=1)                # [N_tot, 2F]   f32
        outs = []
        off = 0
        for t, n_t in enumerate(rows):                                 # unrolled, static slices
            xt = x_cat[off:off + n_t].astype(jnp.bfloat16)
            y = jnp.dot(xt, w_ref[t], preferred_element_type=jnp.float32)
            outs.append(jnp.maximum(y + b_ref[t], 0.0))                # + bias, fused relu
            off += n_t
        return jnp.concatenate(outs, axis=0)                           # [N_tot, F_out] f32

    h1 = sage_layer(xd, w1_ref, b1_ref)      # conv1 + relu  (word | sequence | pos)
    h2 = sage_layer(h1, w2_ref, b2_ref)      # conv2 + relu
    y = jnp.dot(h2[:n_word].astype(jnp.bfloat16), wfc_ref[...],
                preferred_element_type=jnp.float32)                    # fc on 'word'
    o_ref[...] = (y + bfc_ref[...]).astype(o_ref.dtype)


# ----------------------------------------------------------------------------
# Glue: dense normalized adjacency, parameter init / packing, forward wrapper.
# ----------------------------------------------------------------------------
def mean_adjacency(edge_index, n_src, n_dst):
    """Dense [n_dst, n_src] A with A @ x_src == scatter_mean(x_src[src], dst)."""
    src, dst = edge_index[0], edge_index[1]
    a = jnp.zeros((n_dst, n_src), jnp.float32).at[dst, src].add(1.0)
    deg = a.sum(axis=1, keepdims=True)
    return a / jnp.maximum(deg, 1.0)


def init_sage_params(key, f_in, f_out):
    kl, kr, kb = jax.random.split(key, 3)
    scale = 1.0 / jnp.sqrt(jnp.float32(f_in))
    return {
        "wl": jax.random.normal(kl, (f_in, f_out), jnp.float32) * scale,
        "wr": jax.random.normal(kr, (f_in, f_out), jnp.float32) * scale,
        "bl": jax.random.normal(kb, (1, f_out), jnp.float32) * 0.01,
    }


def init_params(key, in_channels, hidden_channels, out_channels):
    keys = jax.random.split(key, 7)
    params = {
        "c1": {
            "dep": init_sage_params(keys[0], in_channels, hidden_channels),
            "seq": init_sage_params(keys[1], in_channels, hidden_channels),
            "pos": init_sage_params(keys[2], in_channels, hidden_channels),
        },
        "c2": {
            "dep": init_sage_params(keys[3], hidden_channels, hidden_channels),
            "seq": init_sage_params(keys[4], hidden_channels, hidden_channels),
            "pos": init_sage_params(keys[5], hidden_channels, hidden_channels),
        },
    }
    kw, kb = jax.random.split(keys[6])
    scale = 1.0 / jnp.sqrt(jnp.float32(hidden_channels))
    params["fc"] = {
        "w": jax.random.normal(kw, (hidden_channels, out_channels), jnp.float32) * scale,
        "b": jax.random.normal(kb, (1, out_channels), jnp.float32) * 0.01,
    }
    return params


def pack_params(params, in_channels, hidden_channels, out_channels):
    """Pad channels to multiples of 128 (lane-dense), merge W_l/W_r, stack per dst type."""
    fp = _round_up(in_channels, _LANE)
    hp = _round_up(hidden_channels, _LANE)
    op = _round_up(out_channels, _LANE)
    order = ("dep", "seq", "pos")   # dst order: word, sequence, pos

    def stack_layer(layer, f_in_p, f_out_p):
        ws, bs = [], []
        for k in order:
            p = layer[k]
            w = jnp.concatenate([_pad2(p["wl"], f_in_p, f_out_p),
                                 _pad2(p["wr"], f_in_p, f_out_p)], axis=0)
            ws.append(w)
            bs.append(_pad2(p["bl"], 1, f_out_p))
        return jnp.stack(ws).astype(jnp.bfloat16), jnp.stack(bs).astype(jnp.float32)

    w1, b1 = stack_layer(params["c1"], fp, hp)        # [3, 2*fp, hp], [3, 1, hp]
    w2, b2 = stack_layer(params["c2"], hp, hp)        # [3, 2*hp, hp], [3, 1, hp]
    wfc = _pad2(params["fc"]["w"], hp, op).astype(jnp.bfloat16)
    bfc = _pad2(params["fc"]["b"], 1, op).astype(jnp.float32)
    return {"w1": w1, "b1": b1, "w2": w2, "b2": b2, "wfc": wfc, "bfc": bfc,
            "fp": fp, "hp": hp, "op": op}


def hetero_sage_forward(packed, x_word, x_seq, x_pos, adj_ww, adj_sw, adj_pw,
                        out_channels):
    """Full HeteroSAGE forward in a single fused pallas_call. Returns fc(x_word)."""
    n_word, n_seq, n_pos = x_word.shape[0], x_seq.shape[0], x_pos.shape[0]
    nwp = _round_up(n_word, _SUBLANE)
    nsp = _round_up(n_seq, _SUBLANE)
    npp = _round_up(n_pos, _SUBLANE)
    fp, op = packed["fp"], packed["op"]

    # Row-stack: all edge types aggregate from x_word -> one [N_tot, n_word_p] adjacency.
    # Padded src columns / dst rows are zero, so padding never influences real rows.
    a_stack = jnp.concatenate([_pad2(adj_ww, nwp, nwp),
                               _pad2(adj_sw, nsp, nwp),
                               _pad2(adj_pw, npp, nwp)], axis=0).astype(jnp.bfloat16)
    xd_stack = jnp.concatenate([_pad2(x_word, nwp, fp),
                                _pad2(x_seq, nsp, fp),
                                _pad2(x_pos, npp, fp)], axis=0).astype(jnp.float32)

    kernel = functools.partial(_fused_hetero_sage_kernel, rows=(nwp, nsp, npp))
    out_padded = pl.pallas_call(
        kernel,
        out_shape=jax.ShapeDtypeStruct((nwp, op), jnp.float32),
        in_specs=[_vmem_spec()] * 8,
        out_specs=_vmem_spec(),
    )(a_stack, xd_stack, packed["w1"], packed["b1"], packed["w2"], packed["b2"],
      packed["wfc"], packed["bfc"])
    return out_padded[:n_word, :out_channels]


# ----------------------------------------------------------------------------
# Pure-JAX reference (f32) for a sanity check.
# ----------------------------------------------------------------------------
def reference_forward(params, x_word, x_seq, x_pos, adj_ww, adj_sw, adj_pw):
    def sage(p, adj, x_src, x_dst):
        return (adj @ x_src) @ p["wl"] + p["bl"] + x_dst @ p["wr"]

    def layer(lp, xw, xs, xp):
        return (jax.nn.relu(sage(lp["dep"], adj_ww, xw, xw)),
                jax.nn.relu(sage(lp["seq"], adj_sw, xw, xs)),
                jax.nn.relu(sage(lp["pos"], adj_pw, xw, xp)))

    w, s, p = layer(params["c1"], x_word, x_seq, x_pos)
    w, s, p = layer(params["c2"], w, s, p)
    return w @ params["fc"]["w"] + params["fc"]["b"]


if __name__ == "__main__":
    # Small synthetic hetero-graph.
    in_channels, hidden_channels, out_channels = 8, 32, 16
    n_word, n_seq, n_pos = 16, 8, 8
    e_dep, e_seq = 40, 24

    key = jax.random.PRNGKey(0)
    (k_xw, k_xs, k_xp, k_e1, k_e2, k_e3, k_e4, k_e5, k_p) = jax.random.split(key, 9)

    x_word = jax.random.normal(k_xw, (n_word, in_channels), jnp.float32)
    x_seq = jax.random.normal(k_xs, (n_seq, in_channels), jnp.float32)
    x_pos = jax.random.normal(k_xp, (n_pos, in_channels), jnp.float32)

    # edge_index convention: row 0 = src, row 1 = dst.
    edge_dep = jnp.stack([
        jax.random.randint(k_e1, (e_dep,), 0, n_word),
        jax.random.randint(k_e2, (e_dep,), 0, n_word),
    ])  # ('word', 'depends_on', 'word')
    edge_seq = jnp.stack([
        jax.random.randint(k_e3, (e_seq,), 0, n_word),
        jax.random.randint(k_e4, (e_seq,), 0, n_seq),
    ])  # ('word', 'sequence', 'sequence')
    edge_pos = jnp.stack([
        jnp.arange(n_word, dtype=jnp.int32),
        jax.random.randint(k_e5, (n_word,), 0, n_pos),
    ])  # ('word', 'has_pos', 'pos')

    adj_ww = mean_adjacency(edge_dep, n_word, n_word)  # [n_word, n_word]
    adj_sw = mean_adjacency(edge_seq, n_word, n_seq)   # [n_seq,  n_word]
    adj_pw = mean_adjacency(edge_pos, n_word, n_pos)   # [n_pos,  n_word]

    params = init_params(k_p, in_channels, hidden_channels, out_channels)
    packed = pack_params(params, in_channels, hidden_channels, out_channels)

    x_out = hetero_sage_forward(packed, x_word, x_seq, x_pos,
                                adj_ww, adj_sw, adj_pw, out_channels)
    jax.block_until_ready(x_out)

    assert x_out.shape == (n_word, out_channels)
    assert x_out.dtype == jnp.float32
    assert bool(jnp.all(jnp.isfinite(x_out)))

    # Sanity check vs. f32 reference (kernel uses bf16 MXU operands -> loose tolerance).
    ref = reference_forward(params, x_word, x_seq, x_pos, adj_ww, adj_sw, adj_pw)
    rel_err = float(jnp.max(jnp.abs(x_out - ref)) / (jnp.max(jnp.abs(ref)) + 1e-6))
    assert rel_err < 5e-2, f"relative error too large: {rel_err}"

    print("KERNEL_OK")
</pallas_src>

<mosaic_0001>
module attributes {stable_mosaic.version = 11 : i64} {
  func.func @_fused_hetero_sage_kernel(%arg0: memref<32x16xbf16, #tpu.memory_space<vmem>>, %arg1: memref<32x128xf32, #tpu.memory_space<vmem>>, %arg2: memref<3x256x128xbf16, #tpu.memory_space<vmem>>, %arg3: memref<3x1x128xf32, #tpu.memory_space<vmem>>, %arg4: memref<3x256x128xbf16, #tpu.memory_space<vmem>>, %arg5: memref<3x1x128xf32, #tpu.memory_space<vmem>>, %arg6: memref<128x128xbf16, #tpu.memory_space<vmem>>, %arg7: memref<1x128xf32, #tpu.memory_space<vmem>>, %arg8: memref<16x128xf32, #tpu.memory_space<vmem>>) attributes {dimension_semantics = [], scalar_prefetch = 0 : i64, scratch_operands = 0 : i64, tpu.core_type = #tpu.core_type<tc>} {
    %c0 = arith.constant 0 : index
    %c0_0 = arith.constant 0 : index
    %0 = vector.load %arg0[%c0, %c0_0] : memref<32x16xbf16, #tpu.memory_space<vmem>>, vector<32x16xbf16>
    %c0_1 = arith.constant 0 : index
    %c0_2 = arith.constant 0 : index
    %1 = vector.load %arg1[%c0_1, %c0_2] : memref<32x128xf32, #tpu.memory_space<vmem>>, vector<32x128xf32>
    %2 = vector.extract_strided_slice %1 {offsets = [0, 0], sizes = [16, 128], strides = [1, 1]} : vector<32x128xf32> to vector<16x128xf32>
    %3 = arith.truncf %2 : vector<16x128xf32> to vector<16x128xbf16>
    %cst = arith.constant dense<0.000000e+00> : vector<32x128xf32>
    %4 = tpu.matmul %0, %3, %cst {dimension_numbers = #tpu.dot_dimension_numbers<[1], [0], [0], [1], [0, 0, 1, 1], [], []>} : vector<32x16xbf16>, vector<16x128xbf16>, vector<32x128xf32> -> vector<32x128xf32>
    %5 = tpu.concatenate %4, %1 in 1 : vector<32x128xf32>, vector<32x128xf32> -> vector<32x256xf32>
    %6 = vector.extract_strided_slice %5 {offsets = [0, 0], sizes = [16, 256], strides = [1, 1]} : vector<32x256xf32> to vector<16x256xf32>
    %7 = arith.truncf %6 : vector<16x256xf32> to vector<16x256xbf16>
    %c0_3 = arith.constant 0 : index
    %c0_4 = arith.constant 0 : index
    %c0_5 = arith.constant 0 : index
    %8 = vector.load %arg2[%c0_3, %c0_4, %c0_5] : memref<3x256x128xbf16, #tpu.memory_space<vmem>>, vector<1x256x128xbf16>
    %9 = vector.shape_cast %8 : vector<1x256x128xbf16> to vector<256x128xbf16>
    %cst_6 = arith.constant dense<0.000000e+00> : vector<16x128xf32>
    %10 = tpu.matmul %7, %9, %cst_6 {dimension_numbers = #tpu.dot_dimension_numbers<[1], [0], [0], [1], [0, 0, 1, 1], [], []>} : vector<16x256xbf16>, vector<256x128xbf16>, vector<16x128xf32> -> vector<16x128xf32>
    %c0_7 = arith.constant 0 : index
    %c0_8 = arith.constant 0 : index
    %c0_9 = arith.constant 0 : index
    %11 = vector.load %arg3[%c0_7, %c0_8, %c0_9] : memref<3x1x128xf32, #tpu.memory_space<vmem>>, vector<1x1x128xf32>
    %12 = vector.shape_cast %11 : vector<1x1x128xf32> to vector<1x128xf32>
    %13 = vector.broadcast %12 : vector<1x128xf32> to vector<16x128xf32>
    %14 = arith.addf %10, %13 : vector<16x128xf32>
    %cst_10 = arith.constant 0.000000e+00 : f32
    %15 = vector.broadcast %cst_10 : f32 to vector<16x128xf32>
    %16 = arith.maximumf %14, %15 : vector<16x128xf32>
    %17 = vector.extract_strided_slice %5 {offsets = [16, 0], sizes = [8, 256], strides = [1, 1]} : vector<32x256xf32> to vector<8x256xf32>
    %18 = arith.truncf %17 : vector<8x256xf32> to vector<8x256xbf16>
    %c1 = arith.constant 1 : index
    %c0_11 = arith.constant 0 : index
    %c0_12 = arith.constant 0 : index
    %19 = vector.load %arg2[%c1, %c0_11, %c0_12] : memref<3x256x128xbf16, #tpu.memory_space<vmem>>, vector<1x256x128xbf16>
    %20 = vector.shape_cast %19 : vector<1x256x128xbf16> to vector<256x128xbf16>
    %cst_13 = arith.constant dense<0.000000e+00> : vector<8x128xf32>
    %21 = tpu.matmul %18, %20, %cst_13 {dimension_numbers = #tpu.dot_dimension_numbers<[1], [0], [0], [1], [0, 0, 1, 1], [], []>} : vector<8x256xbf16>, vector<256x128xbf16>, vector<8x128xf32> -> vector<8x128xf32>
    %c1_14 = arith.constant 1 : index
    %c0_15 = arith.constant 0 : index
    %c0_16 = arith.constant 0 : index
    %22 = vector.load %arg3[%c1_14, %c0_15, %c0_16] : memref<3x1x128xf32, #tpu.memory_space<vmem>>, vector<1x1x128xf32>
    %23 = vector.shape_cast %22 : vector<1x1x128xf32> to vector<1x128xf32>
    %24 = vector.broadcast %23 : vector<1x128xf32> to vector<8x128xf32>
    %25 = arith.addf %21, %24 : vector<8x128xf32>
    %cst_17 = arith.constant 0.000000e+00 : f32
    %26 = vector.broadcast %cst_17 : f32 to vector<8x128xf32>
    %27 = arith.maximumf %25, %26 : vector<8x128xf32>
    %28 = vector.extract_strided_slice %5 {offsets = [24, 0], sizes = [8, 256], strides = [1, 1]} : vector<32x256xf32> to vector<8x256xf32>
    %29 = arith.truncf %28 : vector<8x256xf32> to vector<8x256xbf16>
    %c2 = arith.constant 2 : index
    %c0_18 = arith.constant 0 : index
    %c0_19 = arith.constant 0 : index
    %30 = vector.load %arg2[%c2, %c0_18, %c0_19] : memref<3x256x128xbf16, #tpu.memory_space<vmem>>, vector<1x256x128xbf16>
    %31 = vector.shape_cast %30 : vector<1x256x128xbf16> to vector<256x128xbf16>
    %cst_20 = arith.constant dense<0.000000e+00> : vector<8x128xf32>
    %32 = tpu.matmul %29, %31, %cst_20 {dimension_numbers = #tpu.dot_dimension_numbers<[1], [0], [0], [1], [0, 0, 1, 1], [], []>} : vector<8x256xbf16>, vector<256x128xbf16>, vector<8x128xf32> -> vector<8x128xf32>
    %c2_21 = arith.constant 2 : index
    %c0_22 = arith.constant 0 : index
    %c0_23 = arith.constant 0 : index
    %33 = vector.load %arg3[%c2_21, %c0_22, %c0_23] : memref<3x1x128xf32, #tpu.memory_space<vmem>>, vector<1x1x128xf32>
    %34 = vector.shape_cast %33 : vector<1x1x128xf32> to vector<1x128xf32>
    %35 = vector.broadcast %34 : vector<1x128xf32> to vector<8x128xf32>
    %36 = arith.addf %32, %35 : vector<8x128xf32>
    %cst_24 = arith.constant 0.000000e+00 : f32
    %37 = vector.broadcast %cst_24 : f32 to vector<8x128xf32>
    %38 = arith.maximumf %36, %37 : vector<8x128xf32>
    %39 = tpu.concatenate %16, %27, %38 in 0 : vector<16x128xf32>, vector<8x128xf32>, vector<8x128xf32> -> vector<32x128xf32>
    %40 = vector.extract_strided_slice %39 {offsets = [0, 0], sizes = [16, 128], strides = [1, 1]} : vector<32x128xf32> to vector<16x128xf32>
    %41 = arith.truncf %40 : vector<16x128xf32> to vector<16x128xbf16>
    %cst_25 = arith.constant dense<0.000000e+00> : vector<32x128xf32>
    %42 = tpu.matmul %0, %41, %cst_25 {dimension_numbers = #tpu.dot_dimension_numbers<[1], [0], [0], [1], [0, 0, 1, 1], [], []>} : vector<32x16xbf16>, vector<16x128xbf16>, vector<32x128xf32> -> vector<32x128xf32>
    %43 = tpu.concatenate %42, %39 in 1 : vector<32x128xf32>, vector<32x128xf32> -> vector<32x256xf32>
    %44 = vector.extract_strided_slice %43 {offsets = [0, 0], sizes = [16, 256], strides = [1, 1]} : vector<32x256xf32> to vector<16x256xf32>
    %45 = arith.truncf %44 : vector<16x256xf32> to vector<16x256xbf16>
    %c0_26 = arith.constant 0 : index
    %c0_27 = arith.constant 0 : index
    %c0_28 = arith.constant 0 : index
    %46 = vector.load %arg4[%c0_26, %c0_27, %c0_28] : memref<3x256x128xbf16, #tpu.memory_space<vmem>>, vector<1x256x128xbf16>
    %47 = vector.shape_cast %46 : vector<1x256x128xbf16> to vector<256x128xbf16>
    %cst_29 = arith.constant dense<0.000000e+00> : vector<16x128xf32>
    %48 = tpu.matmul %45, %47, %cst_29 {dimension_numbers = #tpu.dot_dimension_numbers<[1], [0], [0], [1], [0, 0, 1, 1], [], []>} : vector<16x256xbf16>, vector<256x128xbf16>, vector<16x128xf32> -> vector<16x128xf32>
    %c0_30 = arith.constant 0 : index
    %c0_31 = arith.constant 0 : index
    %c0_32 = arith.constant 0 : index
    %49 = vector.load %arg5[%c0_30, %c0_31, %c0_32] : memref<3x1x128xf32, #tpu.memory_space<vmem>>, vector<1x1x128xf32>
    %50 = vector.shape_cast %49 : vector<1x1x128xf32> to vector<1x128xf32>
    %51 = vector.broadcast %50 : vector<1x128xf32> to vector<16x128xf32>
    %52 = arith.addf %48, %51 : vector<16x128xf32>
    %cst_33 = arith.constant 0.000000e+00 : f32
    %53 = vector.broadcast %cst_33 : f32 to vector<16x128xf32>
    %54 = arith.maximumf %52, %53 : vector<16x128xf32>
    %55 = vector.extract_strided_slice %43 {offsets = [16, 0], sizes = [8, 256], strides = [1, 1]} : vector<32x256xf32> to vector<8x256xf32>
    %56 = arith.truncf %55 : vector<8x256xf32> to vector<8x256xbf16>
    %c1_34 = arith.constant 1 : index
    %c0_35 = arith.constant 0 : index
    %c0_36 = arith.constant 0 : index
    %57 = vector.load %arg4[%c1_34, %c0_35, %c0_36] : memref<3x256x128xbf16, #tpu.memory_space<vmem>>, vector<1x256x128xbf16>
    %58 = vector.shape_cast %57 : vector<1x256x128xbf16> to vector<256x128xbf16>
    %cst_37 = arith.constant dense<0.000000e+00> : vector<8x128xf32>
    %59 = tpu.matmul %56, %58, %cst_37 {dimension_numbers = #tpu.dot_dimension_numbers<[1], [0], [0], [1], [0, 0, 1, 1], [], []>} : vector<8x256xbf16>, vector<256x128xbf16>, vector<8x128xf32> -> vector<8x128xf32>
    %c1_38 = arith.constant 1 : index
    %c0_39 = arith.constant 0 : index
    %c0_40 = arith.constant 0 : index
    %60 = vector.load %arg5[%c1_38, %c0_39, %c0_40] : memref<3x1x128xf32, #tpu.memory_space<vmem>>, vector<1x1x128xf32>
    %61 = vector.shape_cast %60 : vector<1x1x128xf32> to vector<1x128xf32>
    %62 = vector.broadcast %61 : vector<1x128xf32> to vector<8x128xf32>
    %63 = arith.addf %59, %62 : vector<8x128xf32>
    %cst_41 = arith.constant 0.000000e+00 : f32
    %64 = vector.broadcast %cst_41 : f32 to vector<8x128xf32>
    %65 = arith.maximumf %63, %64 : vector<8x128xf32>
    %66 = vector.extract_strided_slice %43 {offsets = [24, 0], sizes = [8, 256], strides = [1, 1]} : vector<32x256xf32> to vector<8x256xf32>
    %67 = arith.truncf %66 : vector<8x256xf32> to vector<8x256xbf16>
    %c2_42 = arith.constant 2 : index
    %c0_43 = arith.constant 0 : index
    %c0_44 = arith.constant 0 : index
    %68 = vector.load %arg4[%c2_42, %c0_43, %c0_44] : memref<3x256x128xbf16, #tpu.memory_space<vmem>>, vector<1x256x128xbf16>
    %69 = vector.shape_cast %68 : vector<1x256x128xbf16> to vector<256x128xbf16>
    %cst_45 = arith.constant dense<0.000000e+00> : vector<8x128xf32>
    %70 = tpu.matmul %67, %69, %cst_45 {dimension_numbers = #tpu.dot_dimension_numbers<[1], [0], [0], [1], [0, 0, 1, 1], [], []>} : vector<8x256xbf16>, vector<256x128xbf16>, vector<8x128xf32> -> vector<8x128xf32>
    %c2_46 = arith.constant 2 : index
    %c0_47 = arith.constant 0 : index
    %c0_48 = arith.constant 0 : index
    %71 = vector.load %arg5[%c2_46, %c0_47, %c0_48] : memref<3x1x128xf32, #tpu.memory_space<vmem>>, vector<1x1x128xf32>
    %72 = vector.shape_cast %71 : vector<1x1x128xf32> to vector<1x128xf32>
    %73 = vector.broadcast %72 : vector<1x128xf32> to vector<8x128xf32>
    %74 = arith.addf %70, %73 : vector<8x128xf32>
    %cst_49 = arith.constant 0.000000e+00 : f32
    %75 = vector.broadcast %cst_49 : f32 to vector<8x128xf32>
    %76 = arith.maximumf %74, %75 : vector<8x128xf32>
    %77 = tpu.concatenate %54, %65, %76 in 0 : vector<16x128xf32>, vector<8x128xf32>, vector<8x128xf32> -> vector<32x128xf32>
    %78 = vector.extract_strided_slice %77 {offsets = [0, 0], sizes = [16, 128], strides = [1, 1]} : vector<32x128xf32> to vector<16x128xf32>
    %79 = arith.truncf %78 : vector<16x128xf32> to vector<16x128xbf16>
    %c0_50 = arith.constant 0 : index
    %c0_51 = arith.constant 0 : index
    %80 = vector.load %arg6[%c0_50, %c0_51] : memref<128x128xbf16, #tpu.memory_space<vmem>>, vector<128x128xbf16>
    %cst_52 = arith.constant dense<0.000000e+00> : vector<16x128xf32>
    %81 = tpu.matmul %79, %80, %cst_52 {dimension_numbers = #tpu.dot_dimension_numbers<[1], [0], [0], [1], [0, 0, 1, 1], [], []>} : vector<16x128xbf16>, vector<128x128xbf16>, vector<16x128xf32> -> vector<16x128xf32>
    %c0_53 = arith.constant 0 : index
    %c0_54 = arith.constant 0 : index
    %82 = vector.load %arg7[%c0_53, %c0_54] : memref<1x128xf32, #tpu.memory_space<vmem>>, vector<1x128xf32>
    %83 = vector.broadcast %82 : vector<1x128xf32> to vector<16x128xf32>
    %84 = arith.addf %81, %83 : vector<16x128xf32>
    %c0_55 = arith.constant 0 : index
    %c0_56 = arith.constant 0 : index
    %85 = vector.load %arg8[%c0_55, %c0_56] : memref<16x128xf32, #tpu.memory_space<vmem>>, vector<16x128xf32>
    tpu.vector_store %arg8[%c0_55, %c0_56], %84 {strides = array<i32>} : memref<16x128xf32, #tpu.memory_space<vmem>>, vector<16x128xf32>,
    return
  }
}

</mosaic_0001>

<llo_original>
// kernel: tpu_custom_call.1
$region0: #{tpu_custom_call.1}
  #allocation0 [shape = 'u32[]', space=smem, size = 0x4, offset = 0x4, fixed_abs, tag = 'smem constant byte address 0x4 - core index']
  #allocation1 [shape = 'u32[144,128]{1,0:T(1,128)}', space=vmem, size = 0x12000, scoped, tag = 'internal scratch']
  %s0 = inlined_call_operand.vmem [shape: bf16[32,16], index: 0, kind: input, shape index: {}]
  %s1 = inlined_call_operand.hbm [shape: f32[32,128], index: 1, kind: input, shape index: {}]
  %s2 = inlined_call_operand.hbm [shape: bf16[3,256,128], index: 2, kind: input, shape index: {}]
  %s3 = inlined_call_operand.vmem [shape: f32[3,1,128], index: 3, kind: input, shape index: {}]
  %s4 = inlined_call_operand.hbm [shape: bf16[3,256,128], index: 4, kind: input, shape index: {}]
  %s5 = inlined_call_operand.vmem [shape: f32[3,1,128], index: 5, kind: input, shape index: {}]
  %s6 = inlined_call_operand.hbm [shape: bf16[128,128], index: 6, kind: input, shape index: {}]
  %s7 = inlined_call_operand.vmem [shape: f32[1,128], index: 7, kind: input, shape index: {}]
  %s8 = inlined_call_operand.hbm [shape: f32[16,128], index: 8, kind: output, shape index: {}]
  %s9 = sld [smem:[#allocation0]]
  $region58: #{tpu_custom_call.1} parent=0
    _
  %s11 = ssub.s32 1, %s9
  %s12 = scalar_select 0, %s11, %s9
  $region1: #{tpu_custom_call.1} parent=0
    #allocation2 [shape = 'u8[16384]{0}', space=vmem, size = 0x4000, scoped, tag = 'input window, operand 1, single buffered']
    #allocation3 [shape = 's32[1]{0}', space=sflag, size = 0x4, scoped, tag = 'scoped memory for tpu_custom_call.1']
    #allocation4 [shape = 's32[1]{0}', space=sflag, size = 0x4, scoped, tag = 'scoped memory for tpu_custom_call.1']
    #allocation5 [shape = 'u8[196608]{0}', space=vmem, size = 0x30000, scoped, tag = 'input window, operand 2, single buffered']
    #allocation6 [shape = 's32[1]{0}', space=sflag, size = 0x4, scoped, tag = 'scoped memory for tpu_custom_call.1']
    #allocation7 [shape = 'u8[196608]{0}', space=vmem, size = 0x30000, scoped, tag = 'input window, operand 4, single buffered']
    #allocation8 [shape = 'u8[32768]{0}', space=vmem, size = 0x8000, scoped, tag = 'input window, operand 6, single buffered']
    #allocation9 [shape = 's32[1]{0}', space=sflag, size = 0x4, scoped, tag = 'scoped memory for tpu_custom_call.1']
    #allocation10 [shape = 'u8[8192]{0}', space=vmem, size = 0x2000, scoped, tag = 'output window, operand 0, single buffered']
    %13 = vsyncpa [#allocation3], 0
    %14 = vsyncpa [#allocation6], 0
    %15 = vsyncpa [#allocation9], 0
    %16 = vsyncpa [#allocation4], 0
    // Predicated region
    $region2: #{tpu_custom_call.1} parent=1 // pred_check
      _
    $region3: #{tpu_custom_call.1} parent=1 // pred_check_branch
      %18 = sbr.rel (0) target = $region5
    $region4: #{tpu_custom_call.1} parent=1 // pred_region
      _
    $region5: #{tpu_custom_call.1} parent=1 // pred_fallthru
      _
    // Predicated region
    $region6: #{tpu_custom_call.1} parent=1 // pred_check
      _
    $region7: #{tpu_custom_call.1} parent=1 // pred_check_branch
      %20 = sbr.rel (0) target = $region9
    $region8: #{tpu_custom_call.1} parent=1 // pred_region
      %s22 = ssub.s32 512, 512
      %23 = vsyncadd [#allocation3], %s22
      %s24 = sshll.u32 [#allocation2], 4
      %s25 = int_to_ptr.vmem [resolvable:$true] %s24
      %30 = dma.hbm_to_vmem [thread:$0]  %s1, 512, %s25, [#allocation3], 128, 128, 8
    $region9: #{tpu_custom_call.1} parent=1 // pred_fallthru
      _
    // Predicated region
    $region10: #{tpu_custom_call.1} parent=1 // pred_check
      _
    $region11: #{tpu_custom_call.1} parent=1 // pred_check_branch
      %32 = sbr.rel (0) target = $region13
    $region12: #{tpu_custom_call.1} parent=1 // pred_region
      %s34 = ssub.s32 6144, 6144
      %35 = vsyncadd [#allocation6], %s34
      %s36 = sshll.u32 [#allocation5], 4
      %s37 = int_to_ptr.vmem [resolvable:$true] %s36
      %42 = dma.hbm_to_vmem [thread:$0]  %s2, 6144, %s37, [#allocation6], 64, 64, 4
    $region13: #{tpu_custom_call.1} parent=1 // pred_fallthru
      _
    // Predicated region
    $region14: #{tpu_custom_call.1} parent=1 // pred_check
      _
    $region15: #{tpu_custom_call.1} parent=1 // pred_check_branch
      %44 = sbr.rel (0) target = $region17
    $region16: #{tpu_custom_call.1} parent=1 // pred_region
      _
    $region17: #{tpu_custom_call.1} parent=1 // pred_fallthru
      _
    // Predicated region
    $region18: #{tpu_custom_call.1} parent=1 // pred_check
      _
    $region19: #{tpu_custom_call.1} parent=1 // pred_check_branch
      %46 = sbr.rel (0) target = $region21
    $region20: #{tpu_custom_call.1} parent=1 // pred_region
      %s48 = ssub.s32 6144, 6144
      %49 = vsyncadd [#allocation6], %s48
      %s50 = sshll.u32 [#allocation7], 4
      %s51 = int_to_ptr.vmem [resolvable:$true] %s50
      %56 = dma.hbm_to_vmem [thread:$0]  %s4, 6144, %s51, [#allocation6], 64, 64, 4
    $region21: #{tpu_custom_call.1} parent=1 // pred_fallthru
      _
    // Predicated region
    $region22: #{tpu_custom_call.1} parent=1 // pred_check
      _
    $region23: #{tpu_custom_call.1} parent=1 // pred_check_branch
      %58 = sbr.rel (0) target = $region25
    $region24: #{tpu_custom_call.1} parent=1 // pred_region
      _
    $region25: #{tpu_custom_call.1} parent=1 // pred_fallthru
      _
    // Predicated region
    $region26: #{tpu_custom_call.1} parent=1 // pred_check
      _
    $region27: #{tpu_custom_call.1} parent=1 // pred_check_branch
      %60 = sbr.rel (0) target = $region29
    $region28: #{tpu_custom_call.1} parent=1 // pred_region
      %s62 = ssub.s32 1024, 1024
      %63 = vsyncadd [#allocation9], %s62
      %s64 = sshll.u32 [#allocation8], 4
      %s65 = int_to_ptr.vmem [resolvable:$true] %s64
      %70 = dma.hbm_to_vmem [thread:$0]  %s6, 1024, %s65, [#allocation9], 64, 64, 4
    $region29: #{tpu_custom_call.1} parent=1 // pred_fallthru
      _
    // Predicated region
    $region30: #{tpu_custom_call.1} parent=1 // pred_check
      _
    $region31: #{tpu_custom_call.1} parent=1 // pred_check_branch
      %72 = sbr.rel (0) target = $region33
    $region32: #{tpu_custom_call.1} parent=1 // pred_region
      _
    $region33: #{tpu_custom_call.1} parent=1 // pred_fallthru
      _
    // Predicated region
    $region34: #{tpu_custom_call.1} parent=1 // pred_check
      _
    $region35: #{tpu_custom_call.1} parent=1 // pred_check_branch
      %74 = sbr.rel (0) target = $region37
    $region36: #{tpu_custom_call.1} parent=1 // pred_region
      %75 = dma.done [#allocation3], 512
    $region37: #{tpu_custom_call.1} parent=1 // pred_fallthru
      _
    // Predicated region
    $region38: #{tpu_custom_call.1} parent=1 // pred_check
      _
    $region39: #{tpu_custom_call.1} parent=1 // pred_check_branch
      %77 = sbr.rel (0) target = $region41
    $region40: #{tpu_custom_call.1} parent=1 // pred_region
      %78 = dma.done [#allocation6], 6144
    $region41: #{tpu_custom_call.1} parent=1 // pred_fallthru
      _
    // Predicated region
    $region42: #{tpu_custom_call.1} parent=1 // pred_check
      _
    $region43: #{tpu_custom_call.1} parent=1 // pred_check_branch
      %80 = sbr.rel (0) target = $region45
    $region44: #{tpu_custom_call.1} parent=1 // pred_region
      %81 = dma.done [#allocation6], 6144
    $region45: #{tpu_custom_call.1} parent=1 // pred_fallthru
      _
    // Predicated region
    $region46: #{tpu_custom_call.1} parent=1 // pred_check
      _
    $region47: #{tpu_custom_call.1} parent=1 // pred_check_branch
      %83 = sbr.rel (0) target = $region49
    $region48: #{tpu_custom_call.1} parent=1 // pred_region
      %84 = dma.done [#allocation9], 1024
    $region49: #{tpu_custom_call.1} parent=1 // pred_fallthru
      _
    %v86 = vld [vmem:[%s0] sm:$0xf]
    %v87 = vld [vmem:[%s0 + $0x4] sm:$0xf]
    %v88 = vld [vmem:[%s0 + $0x8] sm:$0xf]
    %v89 = vld [vmem:[%s0 + $0xc] sm:$0xf]
    %v90 = vld [vmem:[#allocation2] sm:$0xff]
    %v91 = vld [vmem:[#allocation2 + $0x8] sm:$0xff]
    %v92 = vpack.c.bf16 %v91, %v90
    %v97 = vunpack.c.l.b16 %v86
    %v98 = vunpack.c.l.b16 %v87
    %v99 = vunpack.c.l.b16 %v88
    %v100 = vunpack.c.l.b16 %v89
    %v101 = vpack.c.b16 %v98, %v97
    %v102 = vpack.c.b16 %v100, %v99
    %vm103 = vcmask 130048
    %v105 = vsel %vm103, %v101, 0
    %v108 = vsel %vm103, %v102, 0
    %110 = vmatprep.subr.bf16.mxu0 0
    %111 = vmatpush1.bf16.msra.mxu0 %v92
    %112 = vmatprep.subr.bf16.mxu0 0
    %113 = vmatpush1.bf16.msra.mxu0 0
    %114 = vmatprep.subr.bf16.mxu0 0
    %115 = vmatpush1.bf16.msra.mxu0 0
    %116 = vmatprep.subr.bf16.mxu0 0
    %117 = vmatpush1.bf16.msra.mxu0 0
    %118 = vmatprep.subr.bf16.mxu0 0
    %119 = vmatpush1.bf16.msra.mxu0 0
    %120 = vmatprep.subr.bf16.mxu0 0
    %121 = vmatpush1.bf16.msra.mxu0 0
    %122 = vmatprep.subr.bf16.mxu0 0
    %123 = vmatpush1.bf16.msra.mxu0 0
    %124 = vmatprep.subr.bf16.mxu0 0
    %125 = vmatpush1.bf16.msra.mxu0 0
    %126 = vmatprep.subr.bf16.mxu0 0
    %127 = vmatpush1.bf16.msra.mxu0 0
    %128 = vmatprep.subr.bf16.mxu0 0
    %129 = vmatpush1.bf16.msra.mxu0 0
    %130 = vmatprep.subr.bf16.mxu0 0
    %131 = vmatpush1.bf16.msra.mxu0 0
    %132 = vmatprep.subr.bf16.mxu0 0
    %133 = vmatpush1.bf16.msra.mxu0 0
    %134 = vmatprep.subr.bf16.mxu0 0
    %135 = vmatpush1.bf16.msra.mxu0 0
    %136 = vmatprep.subr.bf16.mxu0 0
    %137 = vmatpush1.bf16.msra.mxu0 0
    %138 = vmatprep.subr.bf16.mxu0 0
    %139 = vmatpush1.bf16.msra.mxu0 0
    %140 = vmatprep.subr.bf16.mxu0 0
    %141 = vmatpush1.bf16.msra.mxu0 0
    %142 = vmatprep.mubr.bf16.mxu0 0
    %143 = vmatmul.mubr.bf16.gmra.mrb[0].mxu0 %v105
    %v144 = vpop.f32.mrb[0].mxu0
    %v145 = vadd.f32 0.0, %v144
    %v146 = vpop.f32.mrb[0].mxu0
    %v147 = vpop.f32.mrb[0].mxu0
    %v148 = vadd.f32 0.0, %v147
    %v149 = vpop.f32.mrb[0].mxu0
    %150 = vmatprep.mubr.bf16.mxu0 0
    %151 = vmatmul.mubr.bf16.gmra.mrb[0].mxu0 %v108
    %v152 = vpop.f32.mrb[0].mxu0
    %v153 = vpop.f32.mrb[0].mxu0
    %v154 = vpop.f32.mrb[0].mxu0
    %v155 = vpop.f32.mrb[0].mxu0
    %156 = vdwg.mxu0
    %v157 = vpack.c.bf16 %v148, %v145
    %v158 = vld [vmem:[#allocation5] sm:$0xf]
    %v159 = vld [vmem:[#allocation5 + $0x4] sm:$0xf]
    %v160 = vld [vmem:[#allocation5 + $0x8] sm:$0xf]
    %v161 = vld [vmem:[#allocation5 + $0xc] sm:$0xf]
    %v162 = vld [vmem:[#allocation5 + $0x10] sm:$0xf]
    %v163 = vld [vmem:[#allocation5 + $0x14] sm:$0xf]
    %v164 = vld [vmem:[#allocation5 + $0x18] sm:$0xf]
    %v165 = vld [vmem:[#allocation5 + $0x1c] sm:$0xf]
    %v166 = vld [vmem:[#allocation5 + $0x20] sm:$0xf]
    %v167 = vld [vmem:[#allocation5 + $0x24] sm:$0xf]
    %v168 = vld [vmem:[#allocation5 + $0x28] sm:$0xf]
    %v169 = vld [vmem:[#allocation5 + $0x2c] sm:$0xf]
    %v170 = vld [vmem:[#allocation5 + $0x30] sm:$0xf]
    %v171 = vld [vmem:[#allocation5 + $0x34] sm:$0xf]
    %v172 = vld [vmem:[#allocation5 + $0x38] sm:$0xf]
    %v173 = vld [vmem:[#allocation5 + $0x3c] sm:$0xf]
    %v174 = vld [vmem:[#allocation5 + $0x40] sm:$0xf]
    %v175 = vld [vmem:[#allocation5 + $0x44] sm:$0xf]
    %v176 = vld [vmem:[#allocation5 + $0x48] sm:$0xf]
    %v177 = vld [vmem:[#allocation5 + $0x4c] sm:$0xf]
    %v178 = vld [vmem:[#allocation5 + $0x50] sm:$0xf]
    %v179 = vld [vmem:[#allocation5 + $0x54] sm:$0xf]
    %v180 = vld [vmem:[#allocation5 + $0x58] sm:$0xf]
    %v181 = vld [vmem:[#allocation5 + $0x5c] sm:$0xf]
    %v182 = vld [vmem:[#allocation5 + $0x60] sm:$0xf]
    %v183 = vld [vmem:[#allocation5 + $0x64] sm:$0xf]
    %v184 = vld [vmem:[#allocation5 + $0x68] sm:$0xf]
    %v185 = vld [vmem:[#allocation5 + $0x6c] sm:$0xf]
    %v186 = vld [vmem:[#allocation5 + $0x70] sm:$0xf]
    %v187 = vld [vmem:[#allocation5 + $0x74] sm:$0xf]
    %v188 = vld [vmem:[#allocation5 + $0x78] sm:$0xf]
    %v189 = vld [vmem:[#allocation5 + $0x7c] sm:$0xf]
    %v190 = vld [vmem:[%s3] sm:$0x1]
    %v192 = vlaneseq
    %v193 = vshrl.u32 %v192, 7
    %v194 = vsub.s32 0, %v193
    %v195 = vrot.slane %v190, %v194
    %v229 = vunpack.c.l.b16 %v158
    %v230 = vunpack.c.l.b16 %v159
    %v231 = vunpack.c.l.b16 %v160
    %v232 = vunpack.c.l.b16 %v161
    %v233 = vunpack.c.l.b16 %v162
    %v234 = vunpack.c.l.b16 %v163
    %v235 = vunpack.c.l.b16 %v164
    %v236 = vunpack.c.l.b16 %v165
    %v237 = vunpack.c.l.b16 %v166
    %v238 = vunpack.c.l.b16 %v167
    %v239 = vunpack.c.l.b16 %v168
    %v240 = vunpack.c.l.b16 %v169
    %v241 = vunpack.c.l.b16 %v170
    %v242 = vunpack.c.l.b16 %v171
    %v243 = vunpack.c.l.b16 %v172
    %v244 = vunpack.c.l.b16 %v173
    %v245 = vunpack.c.l.b16 %v174
    %v246 = vunpack.c.l.b16 %v175
    %v247 = vunpack.c.l.b16 %v176
    %v248 = vunpack.c.l.b16 %v177
    %v249 = vunpack.c.l.b16 %v178
    %v250 = vunpack.c.l.b16 %v179
    %v251 = vunpack.c.l.b16 %v180
    %v252 = vunpack.c.l.b16 %v181
    %v253 = vunpack.c.l.b16 %v182
    %v254 = vunpack.c.l.b16 %v183
    %v255 = vunpack.c.l.b16 %v184
    %v256 = vunpack.c.l.b16 %v185
    %v257 = vunpack.c.l.b16 %v186
    %v258 = vunpack.c.l.b16 %v187
    %v259 = vunpack.c.l.b16 %v188
    %v260 = vunpack.c.l.b16 %v189
    %v261 = vpack.c.b16 %v230, %v229
    %v262 = vpack.c.b16 %v232, %v231
    %v263 = vpack.c.b16 %v234, %v233
    %v264 = vpack.c.b16 %v236, %v235
    %v265 = vpack.c.b16 %v238, %v237
    %v266 = vpack.c.b16 %v240, %v239
    %v267 = vpack.c.b16 %v242, %v241
    %v268 = vpack.c.b16 %v244, %v243
    %v269 = vpack.c.b16 %v246, %v245
    %v270 = vpack.c.b16 %v248, %v247
    %v271 = vpack.c.b16 %v250, %v249
    %v272 = vpack.c.b16 %v252, %v251
    %v273 = vpack.c.b16 %v254, %v253
    %v274 = vpack.c.b16 %v256, %v255
    %v275 = vpack.c.b16 %v258, %v257
    %v276 = vpack.c.b16 %v260, %v259
    %293 = vmatprep.subr.bf16.mxu0 0
    %294 = vmatpush1.bf16.msra.mxu0 %v261
    %295 = vmatprep.subr.bf16.mxu0 0
    %296 = vmatpush1.bf16.msra.mxu0 %v262
    %297 = vmatprep.subr.bf16.mxu0 0
    %298 = vmatpush1.bf16.msra.mxu0 %v263
    %299 = vmatprep.subr.bf16.mxu0 0
    %300 = vmatpush1.bf16.msra.mxu0 %v264
    %301 = vmatprep.subr.bf16.mxu0 0
    %302 = vmatpush1.bf16.msra.mxu0 %v265
    %303 = vmatprep.subr.bf16.mxu0 0
    %304 = vmatpush1.bf16.msra.mxu0 %v266
    %305 = vmatprep.subr.bf16.mxu0 0
    %306 = vmatpush1.bf16.msra.mxu0 %v267
    %307 = vmatprep.subr.bf16.mxu0 0
    %308 = vmatpush1.bf16.msra.mxu0 %v268
    %309 = vmatprep.subr.bf16.mxu0 0
    %310 = vmatpush1.bf16.msra.mxu0 %v269
    %311 = vmatprep.subr.bf16.mxu0 0
    %312 = vmatpush1.bf16.msra.mxu0 %v270
    %313 = vmatprep.subr.bf16.mxu0 0
    %314 = vmatpush1.bf16.msra.mxu0 %v271
    %315 = vmatprep.subr.bf16.mxu0 0
    %316 = vmatpush1.bf16.msra.mxu0 %v272
    %317 = vmatprep.subr.bf16.mxu0 0
    %318 = vmatpush1.bf16.msra.mxu0 %v273
    %319 = vmatprep.subr.bf16.mxu0 0
    %320 = vmatpush1.bf16.msra.mxu0 %v274
    %321 = vmatprep.subr.bf16.mxu0 0
    %322 = vmatpush1.bf16.msra.mxu0 %v275
    %323 = vmatprep.subr.bf16.mxu0 0
    %324 = vmatpush1.bf16.msra.mxu0 %v276
    %325 = vmatprep.mubr.bf16.mxu0 %v92
    %326 = vmatmul.mubr.bf16.gmra.mrb[0].mxu0 %v157
    %v327 = vpop.f32.mrb[0].mxu0
    %v328 = vadd.f32 %v195, %v327
    %v329 = vpop.f32.mrb[0].mxu0
    %v330 = vpop.f32.mrb[0].mxu0
    %v331 = vadd.f32 %v195, %v330
    %v332 = vpop.f32.mrb[0].mxu0
    %333 = vdwg.mxu0
    %v334 = vmax.f32 %v328, 0.0
    %v335 = vmax.f32 %v331, 0.0
    %v336 = vpack.c.bf16 %v335, %v334
    %337 = vmatprep.subr.bf16.mxu0 0
    %338 = vmatpush1.bf16.msra.mxu0 %v336
    %339 = vmatprep.subr.bf16.mxu0 0
    %340 = vmatpush1.bf16.msra.mxu0 0
    %341 = vmatprep.subr.bf16.mxu0 0
    %342 = vmatpush1.bf16.msra.mxu0 0
    %343 = vmatprep.subr.bf16.mxu0 0
    %344 = vmatpush1.bf16.msra.mxu0 0
    %345 = vmatprep.subr.bf16.mxu0 0
    %346 = vmatpush1.bf16.msra.mxu0 0
    %347 = vmatprep.subr.bf16.mxu0 0
    %348 = vmatpush1.bf16.msra.mxu0 0
    %349 = vmatprep.subr.bf16.mxu0 0
    %350 = vmatpush1.bf16.msra.mxu0 0
    %351 = vmatprep.subr.bf16.mxu0 0
    %352 = vmatpush1.bf16.msra.mxu0 0
    %353 = vmatprep.subr.bf16.mxu0 0
    %354 = vmatpush1.bf16.msra.mxu0 0
    %355 = vmatprep.subr.bf16.mxu0 0
    %356 = vmatpush1.bf16.msra.mxu0 0
    %357 = vmatprep.subr.bf16.mxu0 0
    %358 = vmatpush1.bf16.msra.mxu0 0
    %359 = vmatprep.subr.bf16.mxu0 0
    %360 = vmatpush1.bf16.msra.mxu0 0
    %361 = vmatprep.subr.bf16.mxu0 0
    %362 = vmatpush1.bf16.msra.mxu0 0
    %363 = vmatprep.subr.bf16.mxu0 0
    %364 = vmatpush1.bf16.msra.mxu0 0
    %365 = vmatprep.subr.bf16.mxu0 0
    %366 = vmatpush1.bf16.msra.mxu0 0
    %367 = vmatprep.subr.bf16.mxu0 0
    %368 = vmatpush1.bf16.msra.mxu0 0
    %369 = vmatprep.mubr.bf16.mxu0 0
    %370 = vmatmul.mubr.bf16.gmra.mrb[0].mxu0 %v105
    %v371 = vpop.f32.mrb[0].mxu0
    %v372 = vadd.f32 0.0, %v371
    %v373 = vpop.f32.mrb[0].mxu0
    %v374 = vpop.f32.mrb[0].mxu0
    %v375 = vadd.f32 0.0, %v374
    %v376 = vpop.f32.mrb[0].mxu0
    %377 = vmatprep.mubr.bf16.mxu0 0
    %378 = vmatmul.mubr.bf16.gmra.mrb[0].mxu0 %v108
    %v379 = vpop.f32.mrb[0].mxu0
    %v380 = vpop.f32.mrb[0].mxu0
    %v381 = vpop.f32.mrb[0].mxu0
    %v382 = vpop.f32.mrb[0].mxu0
    %383 = vdwg.mxu0
    %v384 = vpack.c.bf16 %v375, %v372
    %v385 = vld [vmem:[#allocation7] sm:$0xf]
    %v386 = vld [vmem:[#allocation7 + $0x4] sm:$0xf]
    %v387 = vld [vmem:[#allocation7 + $0x8] sm:$0xf]
    %v388 = vld [vmem:[#allocation7 + $0xc] sm:$0xf]
    %v389 = vld [vmem:[#allocation7 + $0x10] sm:$0xf]
    %v390 = vld [vmem:[#allocation7 + $0x14] sm:$0xf]
    %v391 = vld [vmem:[#allocation7 + $0x18] sm:$0xf]
    %v392 = vld [vmem:[#allocation7 + $0x1c] sm:$0xf]
    %v393 = vld [vmem:[#allocation7 + $0x20] sm:$0xf]
    %v394 = vld [vmem:[#allocation7 + $0x24] sm:$0xf]
    %v395 = vld [vmem:[#allocation7 + $0x28] sm:$0xf]
    %v396 = vld [vmem:[#allocation7 + $0x2c] sm:$0xf]
    %v397 = vld [vmem:[#allocation7 + $0x30] sm:$0xf]
    %v398 = vld [vmem:[#allocation7 + $0x34] sm:$0xf]
    %v399 = vld [vmem:[#allocation7 + $0x38] sm:$0xf]
    %v400 = vld [vmem:[#allocation7 + $0x3c] sm:$0xf]
    %v401 = vld [vmem:[#allocation7 + $0x40] sm:$0xf]
    %v402 = vld [vmem:[#allocation7 + $0x44] sm:$0xf]
    %v403 = vld [vmem:[#allocation7 + $0x48] sm:$0xf]
    %v404 = vld [vmem:[#allocation7 + $0x4c] sm:$0xf]
    %v405 = vld [vmem:[#allocation7 + $0x50] sm:$0xf]
    %v406 = vld [vmem:[#allocation7 + $0x54] sm:$0xf]
    %v407 = vld [vmem:[#allocation7 + $0x58] sm:$0xf]
    %v408 = vld [vmem:[#allocation7 + $0x5c] sm:$0xf]
    %v409 = vld [vmem:[#allocation7 + $0x60] sm:$0xf]
    %v410 = vld [vmem:[#allocation7 + $0x64] sm:$0xf]
    %v411 = vld [vmem:[#allocation7 + $0x68] sm:$0xf]
    %v412 = vld [vmem:[#allocation7 + $0x6c] sm:$0xf]
    %v413 = vld [vmem:[#allocation7 + $0x70] sm:$0xf]
    %v414 = vld [vmem:[#allocation7 + $0x74] sm:$0xf]
    %v415 = vld [vmem:[#allocation7 + $0x78] sm:$0xf]
    %v416 = vld [vmem:[#allocation7 + $0x7c] sm:$0xf]
    %v417 = vld [vmem:[%s5] sm:$0x1]
    %v419 = vlaneseq
    %v420 = vshrl.u32 %v419, 7
    %v421 = vsub.s32 0, %v420
    %v422 = vrot.slane %v417, %v421
    %v456 = vunpack.c.l.b16 %v385
    %v457 = vunpack.c.l.b16 %v386
    %v458 = vunpack.c.l.b16 %v387
    %v459 = vunpack.c.l.b16 %v388
    %v460 = vunpack.c.l.b16 %v389
    %v461 = vunpack.c.l.b16 %v390
    %v462 = vunpack.c.l.b16 %v391
    %v463 = vunpack.c.l.b16 %v392
    %v464 = vunpack.c.l.b16 %v393
    %v465 = vunpack.c.l.b16 %v394
    %v466 = vunpack.c.l.b16 %v395
    %v467 = vunpack.c.l.b16 %v396
    %v468 = vunpack.c.l.b16 %v397
    %v469 = vunpack.c.l.b16 %v398
    %v470 = vunpack.c.l.b16 %v399
    %v471 = vunpack.c.l.b16 %v400
    %v472 = vunpack.c.l.b16 %v401
    %v473 = vunpack.c.l.b16 %v402
    %v474 = vunpack.c.l.b16 %v403
    %v475 = vunpack.c.l.b16 %v404
    %v476 = vunpack.c.l.b16 %v405
    %v477 = vunpack.c.l.b16 %v406
    %v478 = vunpack.c.l.b16 %v407
    %v479 = vunpack.c.l.b16 %v408
    %v480 = vunpack.c.l.b16 %v409
    %v481 = vunpack.c.l.b16 %v410
    %v482 = vunpack.c.l.b16 %v411
    %v483 = vunpack.c.l.b16 %v412
    %v484 = vunpack.c.l.b16 %v413
    %v485 = vunpack.c.l.b16 %v414
    %v486 = vunpack.c.l.b16 %v415
    %v487 = vunpack.c.l.b16 %v416
    %v488 = vpack.c.b16 %v457, %v456
    %v489 = vpack.c.b16 %v459, %v458
    %v490 = vpack.c.b16 %v461, %v460
    %v491 = vpack.c.b16 %v463, %v462
    %v492 = vpack.c.b16 %v465, %v464
    %v493 = vpack.c.b16 %v467, %v466
    %v494 = vpack.c.b16 %v469, %v468
    %v495 = vpack.c.b16 %v471, %v470
    %v496 = vpack.c.b16 %v473, %v472
    %v497 = vpack.c.b16 %v475, %v474
    %v498 = vpack.c.b16 %v477, %v476
    %v499 = vpack.c.b16 %v479, %v478
    %v500 = vpack.c.b16 %v481, %v480
    %v501 = vpack.c.b16 %v483, %v482
    %v502 = vpack.c.b16 %v485, %v484
    %v503 = vpack.c.b16 %v487, %v486
    %520 = vmatprep.subr.bf16.mxu0 0
    %521 = vmatpush1.bf16.msra.mxu0 %v488
    %522 = vmatprep.subr.bf16.mxu0 0
    %523 = vmatpush1.bf16.msra.mxu0 %v489
    %524 = vmatprep.subr.bf16.mxu0 0
    %525 = vmatpush1.bf16.msra.mxu0 %v490
    %526 = vmatprep.subr.bf16.mxu0 0
    %527 = vmatpush1.bf16.msra.mxu0 %v491
    %528 = vmatprep.subr.bf16.mxu0 0
    %529 = vmatpush1.bf16.msra.mxu0 %v492
    %530 = vmatprep.subr.bf16.mxu0 0
    %531 = vmatpush1.bf16.msra.mxu0 %v493
    %532 = vmatprep.subr.bf16.mxu0 0
    %533 = vmatpush1.bf16.msra.mxu0 %v494
    %534 = vmatprep.subr.bf16.mxu0 0
    %535 = vmatpush1.bf16.msra.mxu0 %v495
    %536 = vmatprep.subr.bf16.mxu0 0
    %537 = vmatpush1.bf16.msra.mxu0 %v496
    %538 = vmatprep.subr.bf16.mxu0 0
    %539 = vmatpush1.bf16.msra.mxu0 %v497
    %540 = vmatprep.subr.bf16.mxu0 0
    %541 = vmatpush1.bf16.msra.mxu0 %v498
    %542 = vmatprep.subr.bf16.mxu0 0
    %543 = vmatpush1.bf16.msra.mxu0 %v499
    %544 = vmatprep.subr.bf16.mxu0 0
    %545 = vmatpush1.bf16.msra.mxu0 %v500
    %546 = vmatprep.subr.bf16.mxu0 0
    %547 = vmatpush1.bf16.msra.mxu0 %v501
    %548 = vmatprep.subr.bf16.mxu0 0
    %549 = vmatpush1.bf16.msra.mxu0 %v502
    %550 = vmatprep.subr.bf16.mxu0 0
    %551 = vmatpush1.bf16.msra.mxu0 %v503
    %552 = vmatprep.mubr.bf16.mxu0 %v336
    %553 = vmatmul.mubr.bf16.gmra.mrb[0].mxu0 %v384
    %v554 = vpop.f32.mrb[0].mxu0
    %v555 = vadd.f32 %v422, %v554
    %v556 = vpop.f32.mrb[0].mxu0
    %v557 = vpop.f32.mrb[0].mxu0
    %v558 = vadd.f32 %v422, %v557
    %v559 = vpop.f32.mrb[0].mxu0
    %560 = vdwg.mxu0
    %v561 = vmax.f32 %v555, 0.0
    %v562 = vmax.f32 %v558, 0.0
    %v563 = vpack.c.bf16 %v562, %v561
    %v564 = vld [vmem:[#allocation8] sm:$0xf]
    %v565 = vld [vmem:[#allocation8 + $0x4] sm:$0xf]
    %v566 = vld [vmem:[#allocation8 + $0x8] sm:$0xf]
    %v567 = vld [vmem:[#allocation8 + $0xc] sm:$0xf]
    %v568 = vld [vmem:[#allocation8 + $0x10] sm:$0xf]
    %v569 = vld [vmem:[#allocation8 + $0x14] sm:$0xf]
    %v570 = vld [vmem:[#allocation8 + $0x18] sm:$0xf]
    %v571 = vld [vmem:[#allocation8 + $0x1c] sm:$0xf]
    %v572 = vld [vmem:[#allocation8 + $0x20] sm:$0xf]
    %v573 = vld [vmem:[#allocation8 + $0x24] sm:$0xf]
    %v574 = vld [vmem:[#allocation8 + $0x28] sm:$0xf]
    %v575 = vld [vmem:[#allocation8 + $0x2c] sm:$0xf]
    %v576 = vld [vmem:[#allocation8 + $0x30] sm:$0xf]
    %v577 = vld [vmem:[#allocation8 + $0x34] sm:$0xf]
    %v578 = vld [vmem:[#allocation8 + $0x38] sm:$0xf]
    %v579 = vld [vmem:[#allocation8 + $0x3c] sm:$0xf]
    %v580 = vld [vmem:[%s7] sm:$0x1]
    %v582 = vlaneseq
    %v583 = vshrl.u32 %v582, 7
    %v584 = vsub.s32 0, %v583
    %v585 = vrot.slane %v580, %v584
    %v603 = vunpack.c.l.b16 %v564
    %v604 = vunpack.c.l.b16 %v565
    %v605 = vunpack.c.l.b16 %v566
    %v606 = vunpack.c.l.b16 %v567
    %v607 = vunpack.c.l.b16 %v568
    %v608 = vunpack.c.l.b16 %v569
    %v609 = vunpack.c.l.b16 %v570
    %v610 = vunpack.c.l.b16 %v571
    %v611 = vunpack.c.l.b16 %v572
    %v612 = vunpack.c.l.b16 %v573
    %v613 = vunpack.c.l.b16 %v574
    %v614 = vunpack.c.l.b16 %v575
    %v615 = vunpack.c.l.b16 %v576
    %v616 = vunpack.c.l.b16 %v577
    %v617 = vunpack.c.l.b16 %v578
    %v618 = vunpack.c.l.b16 %v579
    %v619 = vpack.c.b16 %v604, %v603
    %v620 = vpack.c.b16 %v606, %v605
    %v621 = vpack.c.b16 %v608, %v607
    %v622 = vpack.c.b16 %v610, %v609
    %v623 = vpack.c.b16 %v612, %v611
    %v624 = vpack.c.b16 %v614, %v613
    %v625 = vpack.c.b16 %v616, %v615
    %v626 = vpack.c.b16 %v618, %v617
    %635 = vmatprep.subr.bf16.mxu0 0
    %636 = vmatpush1.bf16.msra.mxu0 %v619
    %637 = vmatprep.subr.bf16.mxu0 0
    %638 = vmatpush1.bf16.msra.mxu0 %v620
    %639 = vmatprep.subr.bf16.mxu0 0
    %640 = vmatpush1.bf16.msra.mxu0 %v621
    %641 = vmatprep.subr.bf16.mxu0 0
    %642 = vmatpush1.bf16.msra.mxu0 %v622
    %643 = vmatprep.subr.bf16.mxu0 0
    %644 = vmatpush1.bf16.msra.mxu0 %v623
    %645 = vmatprep.subr.bf16.mxu0 0
    %646 = vmatpush1.bf16.msra.mxu0 %v624
    %647 = vmatprep.subr.bf16.mxu0 0
    %648 = vmatpush1.bf16.msra.mxu0 %v625
    %649 = vmatprep.subr.bf16.mxu0 0
    %650 = vmatpush1.bf16.msra.mxu0 %v626
    %651 = vmatprep.subr.bf16.mxu0 0
    %652 = vmatpush1.bf16.msra.mxu0 0
    %653 = vmatprep.subr.bf16.mxu0 0
    %654 = vmatpush1.bf16.msra.mxu0 0
    %655 = vmatprep.subr.bf16.mxu0 0
    %656 = vmatpush1.bf16.msra.mxu0 0
    %657 = vmatprep.subr.bf16.mxu0 0
    %658 = vmatpush1.bf16.msra.mxu0 0
    %659 = vmatprep.subr.bf16.mxu0 0
    %660 = vmatpush1.bf16.msra.mxu0 0
    %661 = vmatprep.subr.bf16.mxu0 0
    %662 = vmatpush1.bf16.msra.mxu0 0
    %663 = vmatprep.subr.bf16.mxu0 0
    %664 = vmatpush1.bf16.msra.mxu0 0
    %665 = vmatprep.subr.bf16.mxu0 0
    %666 = vmatpush1.bf16.msra.mxu0 0
    %667 = vmatprep.mubr.bf16.mxu0 0
    %668 = vmatmul.mubr.bf16.gmra.mrb[0].mxu0 %v563
    %v669 = vpop.f32.mrb[0].mxu0
    %v670 = vadd.f32 %v585, %v669
    %v671 = vpop.f32.mrb[0].mxu0
    %v672 = vpop.f32.mrb[0].mxu0
    %v673 = vadd.f32 %v585, %v672
    %v674 = vpop.f32.mrb[0].mxu0
    %675 = vdwg.mxu0
    %676 = vst [vmem:[#allocation10] sm:$0xff] %v670
    %677 = vst [vmem:[#allocation10 + $0x8] sm:$0xff] %v673
    // Predicated region
    $region50: #{tpu_custom_call.1} parent=1 // pred_check
      _
    $region51: #{tpu_custom_call.1} parent=1 // pred_check_branch
      %679 = sbr.rel (0) target = $region53
    $region52: #{tpu_custom_call.1} parent=1 // pred_region
      %s681 = ssub.s32 256, 256
      %682 = vsyncadd [#allocation4], %s681
      %s683 = sshll.u32 [#allocation10], 4
      %s684 = int_to_ptr.vmem [resolvable:$true] %s683
      %689 = dma.vmem_to_hbm [thread:$0]  %s684, 256, %s8, [#allocation4], 128, 128, 8
    $region53: #{tpu_custom_call.1} parent=1 // pred_fallthru
      _
    // Predicated region
    $region54: #{tpu_custom_call.1} parent=1 // pred_check
      _
    $region55: #{tpu_custom_call.1} parent=1 // pred_check_branch
      %691 = sbr.rel (0) target = $region57
    $region56: #{tpu_custom_call.1} parent=1 // pred_region
      %692 = dma.done [#allocation4], 256
    $region57: #{tpu_custom_call.1} parent=1 // pred_fallthru
      _
    %693 = vsyncpa [#allocation3], 1
    %694 = vsyncpa [#allocation6], 1
    %695 = vsyncpa [#allocation9], 1
    %696 = vsyncpa [#allocation4], 1

</llo_original>
